<compile_context>
chip_gen: v5e
topology: v5e:2x2
jax: 0.10.0
libtpu: 0.0.40
codegen_flags: <defaults>
</compile_context>

<pallas_src>
from typing import Dict, List, Tuple

import jax
import jax.numpy as jnp
from jax.experimental import pallas as pl
from jax.experimental.pallas import tpu as pltpu

NUM_CLASSES = 2

_TINY_BYTES = 4 * 1024               # below this: plain XLA (fused matvec+exp)
_GRIDLESS_BYTES = 2 * 1024 * 1024    # below this: single un-pipelined pallas_call
_MAX_TM = 8192                       # cap on rows/step (keeps unrolled code sane)


def _round_up(x: int, m: int) -> int:
    return ((x + m - 1) // m) * m


def _tpu_generation_defaults() -> Tuple[int, int]:
    """Returns (target input bytes per grid step, vmem_limit_bytes)."""
    try:
        kind = jax.devices()[0].device_kind.lower()
    except Exception:
        kind = ""
    if "v7" in kind:
        # v7x: 64 MiB physical VMEM / TC -> keep double-buffered inputs small.
        return 4 * 1024 * 1024, 32 * 1024 * 1024
    # v5e / v6e: 128 MiB physical VMEM -> bigger tiles, fewer grid steps.
    return 8 * 1024 * 1024, 64 * 1024 * 1024


def _make_head_exp_kernel(num_features: int):
    """Kernel: out = exp(sum_k rowsum(x_k * w_k) + b), per batch tile."""

    def kernel(*refs):
        x_refs = refs[:num_features]                 # [TM, D_k] native dtype (VMEM)
        w_refs = refs[num_features:2 * num_features]  # [1, D_k] f32 (VMEM)
        b_ref = refs[2 * num_features]               # [1, 1] f32 (SMEM)
        out_ref = refs[2 * num_features + 1]         # [TM, 1] f32 (VMEM)

        acc = None
        for k in range(num_features):
            xk = x_refs[k][...].astype(jnp.float32)   # in-kernel upcast (VPU)
            wk = w_refs[k][...]                       # broadcast over sublanes
            part = jnp.sum(xk * wk, axis=-1, keepdims=True)  # XLU lane reduce
            acc = part if acc is None else acc + part
        # Padding rows of a ragged last tile may hold garbage; Pallas masks the
        # out-of-bounds part of the output write, so the result stays correct.
        out_ref[...] = jnp.exp(acc + b_ref[0, 0])     # EUP exp, scalar bias

    return kernel


def _pallas_gridless(xs, ws, b, vmem_limit):
    B = xs[0].shape[0]
    nf = len(xs)
    in_specs = (
        [pl.BlockSpec(memory_space=pltpu.MemorySpace.VMEM) for _ in xs]
        + [pl.BlockSpec(memory_space=pltpu.MemorySpace.VMEM) for _ in ws]
        + [pl.BlockSpec(memory_space=pltpu.MemorySpace.SMEM)]
    )
    return pl.pallas_call(
        _make_head_exp_kernel(nf),
        out_shape=jax.ShapeDtypeStruct((B, 1), jnp.float32),
        in_specs=in_specs,
        out_specs=pl.BlockSpec(memory_space=pltpu.MemorySpace.VMEM),
        compiler_params=pltpu.CompilerParams(vmem_limit_bytes=vmem_limit),
    )(*xs, *ws, b)


def _pallas_gridded(xs, ws, b, target_tile_bytes, vmem_limit):
    B = xs[0].shape[0]
    nf = len(xs)
    feat_dims = [x.shape[1] for x in xs]
    row_bytes = sum(d * x.dtype.itemsize for d, x in zip(feat_dims, xs))

    # Byte-sized batch tile: multiple of 8, capped, and >= 2 grid steps when
    # the batch allows it (megacore sharding / pipeline overlap).
    tm = max(8, (target_tile_bytes // max(row_bytes, 1)) // 8 * 8)
    b_up = _round_up(B, 8)
    tm = min(tm, b_up, _MAX_TM)
    if tm >= b_up and b_up >= 16:
        tm = max(8, _round_up(pl.cdiv(b_up, 2), 8))
    grid = (pl.cdiv(B, tm),)

    in_specs = (
        [pl.BlockSpec((tm, d), lambda i: (i, 0)) for d in feat_dims]
        + [pl.BlockSpec((1, d), lambda i: (0, 0)) for d in feat_dims]
        + [pl.BlockSpec(memory_space=pltpu.MemorySpace.SMEM)]
    )
    return pl.pallas_call(
        _make_head_exp_kernel(nf),
        grid=grid,
        in_specs=in_specs,
        out_specs=pl.BlockSpec((tm, 1), lambda i: (i, 0)),
        out_shape=jax.ShapeDtypeStruct((B, 1), jnp.float32),
        compiler_params=pltpu.CompilerParams(
            dimension_semantics=("parallel",),
            vmem_limit_bytes=vmem_limit,
        ),
    )(*xs, *ws, b)


@jax.jit
def _model_exp_xla(xs, ws, b):
    # Tiny-call fallback: let XLA fuse the matvec + exp (fixed pallas_call
    # overhead would dominate the work here).
    acc = None
    for x, w in zip(xs, ws):
        p = jnp.sum(x.astype(jnp.float32) * w, axis=-1, keepdims=True)
        acc = p if acc is None else acc + p
    return jnp.exp(acc + b[0, 0])


def _model_exp(xs, ws, b):
    """exp(class-1 logit) for the synthetic linear head, shape [B, 1]."""
    total_bytes = sum(x.size * x.dtype.itemsize for x in xs)
    if total_bytes <= _TINY_BYTES:
        return _model_exp_xla(xs, ws, b)
    target_tile_bytes, vmem_limit = _tpu_generation_defaults()
    if total_bytes <= _GRIDLESS_BYTES:
        return _pallas_gridless(xs, ws, b, vmem_limit)
    return _pallas_gridded(xs, ws, b, target_tile_bytes, vmem_limit)


def prepare_head_params(
    params: Dict[str, jnp.ndarray], feature_dims: Dict[str, int]
) -> Dict[str, jnp.ndarray]:
    """One-time prep: slice the class-1 weight column into per-feature rows
    (sorted key order == concat order), so the forward never touches class 0
    and never materializes a concatenated input."""
    keys = sorted(feature_dims.keys())
    w1 = params["w"][:, 1].astype(jnp.float32)          # [D_total]
    b1 = params["b"][1].astype(jnp.float32).reshape(1, 1)
    slices = {}
    off = 0
    for k in keys:
        d = int(feature_dims[k])
        slices[k] = jax.device_put(w1[off:off + d].reshape(1, d))
        off += d
    return {"w_slices": slices, "b1": jax.device_put(b1)}


def wrapper_forward(
    dense_feature_data: Dict[str, jnp.ndarray],
    sparse_feature_data: List[Tuple[str, List[List[str]]]],
    embedding_feature_data: Dict[str, jnp.ndarray],
    tensor_feature_data: Dict[str, jnp.ndarray],
    head_params: Dict[str, jnp.ndarray],
    debug_flag: str = "__debug_flag__",
) -> Dict[str, jnp.ndarray]:
    is_debug = debug_flag in dense_feature_data

    keys = sorted(tensor_feature_data.keys())
    xs = []
    for k in keys:
        f = tensor_feature_data[k]
        xs.append(f if f.ndim == 2 else f.reshape(f.shape[0], -1))
    ws = [head_params["w_slices"][k] for k in keys]

    # Kernel directly produces exp(outs[:, 1]) as [B, 1]; the reference's
    # `if len(outs.shape) == 1: unsqueeze(0)` branch is unreachable because
    # the synthetic model output is always 2-D.
    exp_col1 = _model_exp(xs, ws, head_params["b1"])

    result = {"predictions": exp_col1[:, 0]}            # shape [B]
    if is_debug:
        for k, v in tensor_feature_data.items():
            result["__debug__" + k] = v
    return result


if __name__ == "__main__":
    key = jax.random.PRNGKey(0)

    def make_case(case_key, batch, dims_dtypes):
        names = sorted(dims_dtypes.keys())
        ks = jax.random.split(case_key, len(names) + 2)
        feats = {}
        for i, name in enumerate(names):
            d, dt = dims_dtypes[name]
            feats[name] = jax.random.normal(ks[i], (batch, d), jnp.float32).astype(dt)
        d_total = sum(d for d, _ in dims_dtypes.values())
        params = {
            "w": 0.05 * jax.random.normal(ks[-2], (d_total, NUM_CLASSES), jnp.float32),
            "b": 0.01 * jax.random.normal(ks[-1], (NUM_CLASSES,), jnp.float32),
        }
        return feats, params

    def reference(feats, params):
        x = jnp.concatenate(
            [feats[k].astype(jnp.float32) for k in sorted(feats)], axis=-1)
        logits1 = jnp.sum(x * params["w"][:, 1][None, :], axis=-1) + params["b"][1]
        return jnp.exp(logits1)

    # Case 1: small batch -> gridless single-invocation Pallas path; one bf16
    # feature exercises the in-kernel upcast; debug-flag echo is exercised.
    feats1, params1 = make_case(
        jax.random.fold_in(key, 1), 64,
        {"f0": (16, jnp.float32), "f1": (16, jnp.bfloat16)})
    head1 = prepare_head_params(params1, {k: v.shape[-1] for k, v in feats1.items()})
    out1 = wrapper_forward(
        {"__debug_flag__": jnp.zeros((1,), jnp.float32)}, [], {}, feats1, head1)
    preds1 = jax.block_until_ready(out1["predictions"])
    assert preds1.shape == (64,)
    assert "__debug__f0" in out1 and "__debug__f1" in out1
    ref1 = reference(feats1, params1)
    assert jnp.allclose(preds1, ref1, rtol=1e-4, atol=1e-5)

    # Case 2: larger batch -> batch-tiled grid path (byte-sized tiles, >= 2
    # grid steps, native-dtype DMA), still modest in absolute size.
    feats2, params2 = make_case(
        jax.random.fold_in(key, 2), 6000,
        {"a": (64, jnp.float32), "b": (64, jnp.bfloat16)})
    head2 = prepare_head_params(params2, {k: v.shape[-1] for k, v in feats2.items()})
    out2 = wrapper_forward({}, [], {}, feats2, head2)
    preds2 = jax.block_until_ready(out2["predictions"])
    assert preds2.shape == (6000,)
    ref2 = reference(feats2, params2)
    assert jnp.allclose(preds2, ref2, rtol=1e-4, atol=1e-5)

    print("KERNEL_OK")
</pallas_src>

<mosaic_0001>
module attributes {stable_mosaic.version = 11 : i64} {
  func.func @kernel(%arg0: memref<64x16xf32, #tpu.memory_space<vmem>>, %arg1: memref<64x16xbf16, #tpu.memory_space<vmem>>, %arg2: memref<1x16xf32, #tpu.memory_space<vmem>>, %arg3: memref<1x16xf32, #tpu.memory_space<vmem>>, %arg4: memref<1x1xf32, #tpu.memory_space<smem>>, %arg5: memref<64x1xf32, #tpu.memory_space<vmem>>) attributes {dimension_semantics = [], scalar_prefetch = 0 : i64, scratch_operands = 0 : i64, tpu.core_type = #tpu.core_type<tc>} {
    %c0 = arith.constant 0 : index
    %c0_0 = arith.constant 0 : index
    %0 = vector.load %arg0[%c0, %c0_0] : memref<64x16xf32, #tpu.memory_space<vmem>>, vector<64x16xf32>
    %c0_1 = arith.constant 0 : index
    %c0_2 = arith.constant 0 : index
    %1 = vector.load %arg2[%c0_1, %c0_2] : memref<1x16xf32, #tpu.memory_space<vmem>>, vector<1x16xf32>
    %2 = vector.broadcast %1 : vector<1x16xf32> to vector<64x16xf32>
    %3 = arith.mulf %0, %2 : vector<64x16xf32>
    %cst = arith.constant dense<0.000000e+00> : vector<64xf32>
    %4 = vector.multi_reduction <add>, %3, %cst [1] : vector<64x16xf32> to vector<64xf32>
    %5 = vector.shape_cast %4 : vector<64xf32> to vector<64x1xf32>
    %c0_3 = arith.constant 0 : index
    %c0_4 = arith.constant 0 : index
    %6 = vector.load %arg1[%c0_3, %c0_4] : memref<64x16xbf16, #tpu.memory_space<vmem>>, vector<64x16xbf16>
    %7 = arith.extf %6 : vector<64x16xbf16> to vector<64x16xf32>
    %c0_5 = arith.constant 0 : index
    %c0_6 = arith.constant 0 : index
    %8 = vector.load %arg3[%c0_5, %c0_6] : memref<1x16xf32, #tpu.memory_space<vmem>>, vector<1x16xf32>
    %9 = vector.broadcast %8 : vector<1x16xf32> to vector<64x16xf32>
    %10 = arith.mulf %7, %9 : vector<64x16xf32>
    %cst_7 = arith.constant dense<0.000000e+00> : vector<64xf32>
    %11 = vector.multi_reduction <add>, %10, %cst_7 [1] : vector<64x16xf32> to vector<64xf32>
    %12 = vector.shape_cast %11 : vector<64xf32> to vector<64x1xf32>
    %13 = arith.addf %5, %12 : vector<64x1xf32>
    %c0_8 = arith.constant 0 : index
    %c0_9 = arith.constant 0 : index
    %14 = memref.load %arg4[%c0_8, %c0_9] : memref<1x1xf32, #tpu.memory_space<smem>>
    %15 = vector.broadcast %14 : f32 to vector<64x1xf32>
    %16 = arith.addf %13, %15 : vector<64x1xf32>
    %17 = math.exp %16 : vector<64x1xf32>
    %c0_10 = arith.constant 0 : index
    %c0_11 = arith.constant 0 : index
    %18 = vector.load %arg5[%c0_10, %c0_11] : memref<64x1xf32, #tpu.memory_space<vmem>>, vector<64x1xf32>
    tpu.vector_store %arg5[%c0_10, %c0_11], %17 {strides = array<i32>} : memref<64x1xf32, #tpu.memory_space<vmem>>, vector<64x1xf32>,
    return
  }
}

</mosaic_0001>

<llo_original>
// kernel: tpu_custom_call.1
$region0: #{tpu_custom_call.1}
  #allocation0 [shape = 'u32[]', space=smem, size = 0x4, offset = 0x4, fixed_abs, tag = 'smem constant byte address 0x4 - core index']
  #allocation1 [shape = 'u32[72,128]{1,0:T(1,128)}', space=vmem, size = 0x9000, scoped, tag = 'internal scratch']
  #allocation2 [shape = 'f32[1,1]{1,0:T(1,128)S(6)}', space=smem, size = 0x200, scoped, tag = 'scoped memory for tpu_custom_call.1']
  %s0 = inlined_call_operand.vmem [shape: f32[64,16], index: 0, kind: input, shape index: {}]
  %s1 = inlined_call_operand.vmem [shape: bf16[64,16], index: 1, kind: input, shape index: {}]
  %s2 = inlined_call_operand.vmem [shape: f32[1,16], index: 2, kind: input, shape index: {}]
  %s3 = inlined_call_operand.vmem [shape: f32[1,16], index: 3, kind: input, shape index: {}]
  %s4 = inlined_call_operand.<no memory space> [shape: f32[1,1], index: 4, kind: input, shape index: {}]
  %s5 = inlined_call_operand.vmem [shape: f32[64,1], index: 5, kind: output, shape index: {}]
  %s6 = sld [smem:[#allocation0]]
  $region30: #{tpu_custom_call.1} parent=0
    _
  %s8 = ssub.s32 1, %s6
  %s9 = scalar_select 0, %s8, %s6
  %10 = sst [smem:[#allocation2]] %s4
  // Predicated region
  $region2: #{tpu_custom_call.1} parent=0 // pred_check
    _
  $region3: #{tpu_custom_call.1} parent=0 // pred_check_branch
    %12 = sbr.rel (0) target = $region5
  $region4: #{tpu_custom_call.1} parent=0 // pred_region
    _
  $region5: #{tpu_custom_call.1} parent=0 // pred_fallthru
    _
  // Predicated region
  $region6: #{tpu_custom_call.1} parent=0 // pred_check
    _
  $region7: #{tpu_custom_call.1} parent=0 // pred_check_branch
    %14 = sbr.rel (0) target = $region9
  $region8: #{tpu_custom_call.1} parent=0 // pred_region
    _
  $region9: #{tpu_custom_call.1} parent=0 // pred_fallthru
    _
  // Predicated region
  $region10: #{tpu_custom_call.1} parent=0 // pred_check
    _
  $region11: #{tpu_custom_call.1} parent=0 // pred_check_branch
    %16 = sbr.rel (0) target = $region13
  $region12: #{tpu_custom_call.1} parent=0 // pred_region
    _
  $region13: #{tpu_custom_call.1} parent=0 // pred_fallthru
    _
  // Predicated region
  $region14: #{tpu_custom_call.1} parent=0 // pred_check
    _
  $region15: #{tpu_custom_call.1} parent=0 // pred_check_branch
    %18 = sbr.rel (0) target = $region17
  $region16: #{tpu_custom_call.1} parent=0 // pred_region
    _
  $region17: #{tpu_custom_call.1} parent=0 // pred_fallthru
    _
  // Predicated region
  $region18: #{tpu_custom_call.1} parent=0 // pred_check
    _
  $region19: #{tpu_custom_call.1} parent=0 // pred_check_branch
    %20 = sbr.rel (0) target = $region21
  $region20: #{tpu_custom_call.1} parent=0 // pred_region
    _
  $region21: #{tpu_custom_call.1} parent=0 // pred_fallthru
    _
  %v21 = vld [vmem:[%s0] sm:$0xff]
  %v22 = vld [vmem:[%s0 + $0x8] sm:$0xff]
  %v23 = vld [vmem:[%s0 + $0x10] sm:$0xff]
  %v24 = vld [vmem:[%s0 + $0x18] sm:$0xff]
  %v25 = vld [vmem:[%s0 + $0x20] sm:$0xff]
  %v26 = vld [vmem:[%s0 + $0x28] sm:$0xff]
  %v27 = vld [vmem:[%s0 + $0x30] sm:$0xff]
  %v28 = vld [vmem:[%s0 + $0x38] sm:$0xff]
  %v29 = vld [vmem:[%s2] sm:$0x1]
  %v31 = vperm.slane %v29, 0
  %v33 = vmul.f32 %v21, %v31
  %v34 = vmul.f32 %v22, %v31
  %v35 = vmul.f32 %v23, %v31
  %v36 = vmul.f32 %v24, %v31
  %v37 = vmul.f32 %v25, %v31
  %v38 = vmul.f32 %v26, %v31
  %v39 = vmul.f32 %v27, %v31
  %v40 = vmul.f32 %v28, %v31
  %vm41 = vcmask 130048
  %v42 = vsel %vm41, %v33, 0.0
  %43 = vadd.xlane.f32.xlu0 %v42
  %v44 = vpop.xlane.xlu0 %43
  %v45 = vsel %vm41, %v34, 0.0
  %46 = vadd.xlane.f32.xlu0 %v45
  %v47 = vpop.xlane.xlu0 %46
  %v48 = vsel %vm41, %v35, 0.0
  %49 = vadd.xlane.f32.xlu0 %v48
  %v50 = vpop.xlane.xlu0 %49
  %v51 = vsel %vm41, %v36, 0.0
  %52 = vadd.xlane.f32.xlu0 %v51
  %v53 = vpop.xlane.xlu0 %52
  %v54 = vsel %vm41, %v37, 0.0
  %55 = vadd.xlane.f32.xlu0 %v54
  %v56 = vpop.xlane.xlu0 %55
  %v57 = vsel %vm41, %v38, 0.0
  %58 = vadd.xlane.f32.xlu0 %v57
  %v59 = vpop.xlane.xlu0 %58
  %v60 = vsel %vm41, %v39, 0.0
  %61 = vadd.xlane.f32.xlu0 %v60
  %v62 = vpop.xlane.xlu0 %61
  %v63 = vsel %vm41, %v40, 0.0
  %64 = vadd.xlane.f32.xlu0 %v63
  %v65 = vpop.xlane.xlu0 %64
  %v66 = vld [vmem:[%s1] sm:$0xf]
  %v67 = vld [vmem:[%s1 + $0x4] sm:$0xf]
  %v68 = vld [vmem:[%s1 + $0x8] sm:$0xf]
  %v69 = vld [vmem:[%s1 + $0xc] sm:$0xf]
  %v70 = vld [vmem:[%s1 + $0x10] sm:$0xf]
  %v71 = vld [vmem:[%s1 + $0x14] sm:$0xf]
  %v72 = vld [vmem:[%s1 + $0x18] sm:$0xf]
  %v73 = vld [vmem:[%s1 + $0x1c] sm:$0xf]
  %v74 = vunpack.c.l.bf16 %v66
  %v75 = vunpack.c.l.bf16 %v67
  %v76 = vunpack.c.l.bf16 %v68
  %v77 = vunpack.c.l.bf16 %v69
  %v78 = vunpack.c.l.bf16 %v70
  %v79 = vunpack.c.l.bf16 %v71
  %v80 = vunpack.c.l.bf16 %v72
  %v81 = vunpack.c.l.bf16 %v73
  %v82 = vld [vmem:[%s3] sm:$0x1]
  %v84 = vperm.slane %v82, 0
  %v86 = vmul.f32 %v74, %v84
  %v87 = vmul.f32 %v75, %v84
  %v88 = vmul.f32 %v76, %v84
  %v89 = vmul.f32 %v77, %v84
  %v90 = vmul.f32 %v78, %v84
  %v91 = vmul.f32 %v79, %v84
  %v92 = vmul.f32 %v80, %v84
  %v93 = vmul.f32 %v81, %v84
  %v94 = vsel %vm41, %v86, 0.0
  %95 = vadd.xlane.f32.xlu0 %v94
  %v96 = vpop.xlane.xlu0 %95
  %v97 = vsel %vm41, %v87, 0.0
  %98 = vadd.xlane.f32.xlu0 %v97
  %v99 = vpop.xlane.xlu0 %98
  %v100 = vsel %vm41, %v88, 0.0
  %101 = vadd.xlane.f32.xlu0 %v100
  %v102 = vpop.xlane.xlu0 %101
  %v103 = vsel %vm41, %v89, 0.0
  %104 = vadd.xlane.f32.xlu0 %v103
  %v105 = vpop.xlane.xlu0 %104
  %v106 = vsel %vm41, %v90, 0.0
  %107 = vadd.xlane.f32.xlu0 %v106
  %v108 = vpop.xlane.xlu0 %107
  %v109 = vsel %vm41, %v91, 0.0
  %110 = vadd.xlane.f32.xlu0 %v109
  %v111 = vpop.xlane.xlu0 %110
  %v112 = vsel %vm41, %v92, 0.0
  %113 = vadd.xlane.f32.xlu0 %v112
  %v114 = vpop.xlane.xlu0 %113
  %v115 = vsel %vm41, %v93, 0.0
  %116 = vadd.xlane.f32.xlu0 %v115
  %v117 = vpop.xlane.xlu0 %116
  %v118 = vadd.f32 %v44, %v96
  %v119 = vadd.f32 %v47, %v99
  %v120 = vadd.f32 %v50, %v102
  %v121 = vadd.f32 %v53, %v105
  %v122 = vadd.f32 %v56, %v108
  %v123 = vadd.f32 %v59, %v111
  %v124 = vadd.f32 %v62, %v114
  %v125 = vadd.f32 %v65, %v117
  %s126 = sld [smem:[#allocation2]]
  %v127 = vstv %s126
  %v128 = vadd.f32 %v118, %v127
  %v129 = vadd.f32 %v119, %v127
  %v130 = vadd.f32 %v120, %v127
  %v131 = vadd.f32 %v121, %v127
  %v132 = vadd.f32 %v122, %v127
  %v133 = vadd.f32 %v123, %v127
  %v134 = vadd.f32 %v124, %v127
  %v135 = vadd.f32 %v125, %v127
  %v136 = vmul.f32 %v128, 1.442695
  %v137 = vpow.pop %v136
  %v138 = vmul.f32 %v129, 1.442695
  %v139 = vpow.pop %v138
  %v140 = vmul.f32 %v130, 1.442695
  %v141 = vpow.pop %v140
  %v142 = vmul.f32 %v131, 1.442695
  %v143 = vpow.pop %v142
  %v144 = vmul.f32 %v132, 1.442695
  %v145 = vpow.pop %v144
  %v146 = vmul.f32 %v133, 1.442695
  %v147 = vpow.pop %v146
  %v148 = vmul.f32 %v134, 1.442695
  %v149 = vpow.pop %v148
  %v150 = vmul.f32 %v135, 1.442695
  %v151 = vpow.pop %v150
  %vm152 = vcmask 7168
  %153 = vst.msk [vmem:[%s5] sm:$0xff] %vm152, %v137
  %154 = vst.msk [vmem:[%s5 + $0x8] sm:$0xff] %vm152, %v139
  %155 = vst.msk [vmem:[%s5 + $0x10] sm:$0xff] %vm152, %v141
  %156 = vst.msk [vmem:[%s5 + $0x18] sm:$0xff] %vm152, %v143
  %157 = vst.msk [vmem:[%s5 + $0x20] sm:$0xff] %vm152, %v145
  %158 = vst.msk [vmem:[%s5 + $0x28] sm:$0xff] %vm152, %v147
  %159 = vst.msk [vmem:[%s5 + $0x30] sm:$0xff] %vm152, %v149
  %160 = vst.msk [vmem:[%s5 + $0x38] sm:$0xff] %vm152, %v151
  // Predicated region
  $region22: #{tpu_custom_call.1} parent=0 // pred_check
    _
  $region23: #{tpu_custom_call.1} parent=0 // pred_check_branch
    %162 = sbr.rel (0) target = $region25
  $region24: #{tpu_custom_call.1} parent=0 // pred_region
    _
  $region25: #{tpu_custom_call.1} parent=0 // pred_fallthru
    _
  // Predicated region
  $region26: #{tpu_custom_call.1} parent=0 // pred_check
    _
  $region27: #{tpu_custom_call.1} parent=0 // pred_check_branch
    %164 = sbr.rel (0) target = $region29
  $region28: #{tpu_custom_call.1} parent=0 // pred_region
    _
  $region29: #{tpu_custom_call.1} parent=0 // pred_fallthru
    _

</llo_original>
